<compile_context>
chip_gen: v5e
topology: v5e:2x2
jax: 0.10.0
libtpu: 0.0.40
codegen_flags: <defaults>
</compile_context>

<pallas_src>
import jax
import jax.numpy as jnp
from jax.experimental import pallas as pl
from jax.experimental.pallas import tpu as pltpu

HIDDEN1 = 400
HIDDEN2 = 300
H1_PAD = 512    # 400 -> 512 (multiple of 128)
H2_PAD = 384    # 300 -> 384 (3 full 128-lane tiles; do NOT round to 512)
LANE = 128


def _round_up(x, m):
    return (x + m - 1) // m * m


def critic_kernel(x1_ref, w1_ref, b1_ref, w2h_ref, b2_ref, w3_ref, b3_ref,
                  q_ref):
    h1p = b1_ref.shape[1]   # 512, static

    # ---- fused layer-1: one MXU pass produces [h1_pre | action @ W2a] -----
    y = jnp.dot(x1_ref[...], w1_ref[...], preferred_element_type=jnp.float32)

    # state_encoder epilogue (f32): bias + ReLU on the first 512 lanes only.
    h1 = jnp.maximum(y[:, :h1p] + b1_ref[...], 0.0)
    aw2a = y[:, h1p:]                                   # action @ W2a (f32)

    # ---- action_encoder: h2 = ReLU(h1 @ W2h + a@W2a + b2) ------------------
    h2 = jnp.dot(h1.astype(w2h_ref.dtype), w2h_ref[...],
                 preferred_element_type=jnp.float32) + aw2a
    h2 = jnp.maximum(h2 + b2_ref[...], 0.0)

    # ---- feature_encoder: Linear(300, 1) -----------------------------------
    # N=1 head off the MXU: VPU multiply + XLU lane reduction; b3 in SMEM.
    q_ref[...] = (jnp.sum(h2 * w3_ref[...], axis=-1, keepdims=True)
                  + b3_ref[0, 0])


def critic_forward(state, action, kp, *, batch_tile=2048):
    """state: (B,S) or (S,), action: (B,A) or (A,) -> Q: (B, 1) float32."""
    # PyTorch `len(state.size()) == 1` branch.
    if state.ndim == 1:
        state = state[None, :]
        action = action[None, :]

    B, S = state.shape
    A = action.shape[1]
    din1 = kp["w1"].shape[0]      # S + A (un-padded K)
    n1 = kp["w1"].shape[1]        # H1_PAD + H2_PAD
    h1p = kp["b1"].shape[1]       # H1_PAD
    h2p = kp["w2h"].shape[1]      # H2_PAD
    cdt = kp["w1"].dtype
    assert din1 == S + A, (din1, S, A)

    # Sublane rounding: f32 -> 8 rows, bf16 -> 16, (int8 would be 32).
    sub = 8 * (4 // jnp.dtype(cdt).itemsize)
    # Cap the tile at ceil(B/2) so there are >=2 grid steps when the batch
    # allows (both v7x TensorCores get work via the "parallel" axis).
    half = max(1, -(-B // 2))
    tb = _round_up(min(batch_tile, _round_up(half, sub)), sub)
    Bp = _round_up(B, tb)
    nb = Bp // tb

    # Layer-1 concat folded in the wrapper; batch-pad only (no K padding).
    x1 = jnp.concatenate([state, action], axis=1).astype(cdt)
    if Bp != B:
        x1 = jnp.pad(x1, ((0, Bp - B), (0, 0)))

    def batch_spec(shape):
        return pl.BlockSpec(shape, lambda i: (i, 0))

    def resident(shape):  # same block every grid step -> stays in VMEM
        return pl.BlockSpec(shape, lambda i: (0, 0))

    q = pl.pallas_call(
        critic_kernel,
        out_shape=jax.ShapeDtypeStruct((Bp, 1), jnp.float32),
        grid=(nb,),
        in_specs=[
            batch_spec((tb, din1)),                              # x1 tile
            resident((din1, n1)),                                # W1_aug
            resident((1, h1p)),                                  # b1 (f32)
            resident((h1p, h2p)),                                # W2h
            resident((1, h2p)),                                  # b2 (f32)
            resident((1, h2p)),                                  # w3 row (f32)
            pl.BlockSpec(memory_space=pltpu.MemorySpace.SMEM),   # b3 scalar
        ],
        out_specs=batch_spec((tb, 1)),
        compiler_params=pltpu.CompilerParams(
            dimension_semantics=("parallel",),
            vmem_limit_bytes=48 * 1024 * 1024),
    )(x1, kp["w1"], kp["b1"], kp["w2h"], kp["b2"], kp["w3"], kp["b3"])
    return q[:B]


def init_params(key, state_dim, action_dim):
    """Deterministic synthetic init (uniform, PyTorch-Linear-like fan_in
    scaling), stored unpadded in (in_features, out_features) layout."""
    ks = jax.random.split(key, 6)

    def lin(k, fan_in, shape):
        bound = 1.0 / jnp.sqrt(jnp.float32(fan_in))
        return jax.random.uniform(k, shape, jnp.float32, -bound, bound)

    in1 = state_dim + action_dim
    in2 = HIDDEN1 + action_dim
    return {
        "w1": lin(ks[0], in1, (in1, HIDDEN1)),
        "b1": lin(ks[1], in1, (1, HIDDEN1)),
        "w2": lin(ks[2], in2, (in2, HIDDEN2)),
        "b2": lin(ks[3], in2, (1, HIDDEN2)),
        "w3": lin(ks[4], HIDDEN2, (HIDDEN2, 1)),
        "b3": lin(ks[5], HIDDEN2, (1, 1)),
    }


def pad_params(params, state_dim, action_dim, compute_dtype=jnp.bfloat16):
    """One-time repack for the kernel:
       * lane-pad hidden dims (400->512, 300->384),
       * fold W2's action rows into W1 as extra output columns
         (W1_aug: (S+A, 512+384) producing [h1_pre | a@W2a]),
       * keep biases and the N=1 output row in f32 (epilogue precision),
       * matmul operands in `compute_dtype` (bf16 in production).
    Zero padding is numerically inert through the ReLUs / reduction."""
    S, A = state_dim, action_dim
    din1 = S + A
    n1 = H1_PAD + H2_PAD

    w1 = jnp.zeros((din1, n1), compute_dtype)
    w1 = w1.at[:, :HIDDEN1].set(params["w1"].astype(compute_dtype))
    w1 = w1.at[S:S + A, H1_PAD:H1_PAD + HIDDEN2].set(
        params["w2"][HIDDEN1:].astype(compute_dtype))          # W2 action rows
    b1 = jnp.zeros((1, H1_PAD), jnp.float32).at[:, :HIDDEN1].set(params["b1"])

    w2h = jnp.zeros((H1_PAD, H2_PAD), compute_dtype)
    w2h = w2h.at[:HIDDEN1, :HIDDEN2].set(
        params["w2"][:HIDDEN1].astype(compute_dtype))          # W2 h1 rows
    b2 = jnp.zeros((1, H2_PAD), jnp.float32).at[:, :HIDDEN2].set(params["b2"])

    w3 = jnp.zeros((1, H2_PAD), jnp.float32)
    w3 = w3.at[:, :HIDDEN2].set(params["w3"][:, 0][None, :])
    b3 = params["b3"].astype(jnp.float32)                      # (1, 1) -> SMEM

    return {"w1": w1, "b1": b1, "w2h": w2h, "b2": b2, "w3": w3, "b3": b3}


def critic_ref(state, action, params):
    """Pure-JAX reference (unpadded params) for the correctness check."""
    if state.ndim == 1:
        state = state[None, :]
        action = action[None, :]
    x1 = jnp.concatenate([state, action], axis=1)
    h1 = jnp.maximum(x1 @ params["w1"] + params["b1"], 0.0)
    x2 = jnp.concatenate([h1, action], axis=1)
    h2 = jnp.maximum(x2 @ params["w2"] + params["b2"], 0.0)
    return h2 @ params["w3"] + params["b3"]


if __name__ == "__main__":
    STATE_DIM, ACTION_DIM = 16, 4
    key = jax.random.PRNGKey(0)
    k_s, k_a, k_p = jax.random.split(key, 3)
    params = init_params(k_p, STATE_DIM, ACTION_DIM)

    # --- small-batch f32 path: tight tolerance ------------------------------
    B = 2
    state = jax.random.normal(k_s, (B, STATE_DIM), jnp.float32)
    action = jax.random.normal(k_a, (B, ACTION_DIM), jnp.float32)
    kp_f32 = pad_params(params, STATE_DIM, ACTION_DIM, compute_dtype=jnp.float32)
    q = jax.block_until_ready(critic_forward(state, action, kp_f32))
    q_ref = critic_ref(state, action, params)
    assert q.shape == (B, 1), q.shape
    assert jnp.allclose(q, q_ref, atol=1e-4, rtol=1e-4), (q, q_ref)

    # --- bf16 production path + partial batch tile (multi-step grid) --------
    B2 = 37
    state2 = jax.random.normal(jax.random.PRNGKey(1), (B2, STATE_DIM), jnp.float32)
    action2 = jax.random.normal(jax.random.PRNGKey(2), (B2, ACTION_DIM), jnp.float32)
    kp_bf16 = pad_params(params, STATE_DIM, ACTION_DIM)        # bf16 default
    q2 = jax.block_until_ready(
        critic_forward(state2, action2, kp_bf16, batch_tile=16))
    q2_ref = critic_ref(state2, action2, params)
    assert q2.shape == (B2, 1), q2.shape
    max_err = float(jnp.max(jnp.abs(q2 - q2_ref)))
    assert max_err < 5e-2, max_err   # bf16 MXU operands, f32 accumulation

    print("KERNEL_OK")
</pallas_src>

<mosaic_0001>
module attributes {stable_mosaic.version = 11 : i64} {
  func.func @critic_kernel(%arg0: i32, %arg1: memref<8x20xf32, #tpu.memory_space<vmem>>, %arg2: memref<20x896xf32, #tpu.memory_space<vmem>>, %arg3: memref<1x512xf32, #tpu.memory_space<vmem>>, %arg4: memref<512x384xf32, #tpu.memory_space<vmem>>, %arg5: memref<1x384xf32, #tpu.memory_space<vmem>>, %arg6: memref<1x384xf32, #tpu.memory_space<vmem>>, %arg7: memref<1x1xf32, #tpu.memory_space<smem>>, %arg8: memref<8x1xf32, #tpu.memory_space<vmem>>) attributes {dimension_semantics = [#tpu.dimension_semantics<parallel>], iteration_bounds = array<i64: 1>, scalar_prefetch = 0 : i64, scratch_operands = 0 : i64, tpu.core_type = #tpu.core_type<tc>, window_params = [{transform_indices = @transform_0, window_bounds = array<i64: 8, 20>}, {pipeline_mode = #tpu.pipeline_mode<synchronous>, transform_indices = @transform_1, window_bounds = array<i64: 20, 896>}, {pipeline_mode = #tpu.pipeline_mode<synchronous>, transform_indices = @transform_2, window_bounds = array<i64: 1, 512>}, {pipeline_mode = #tpu.pipeline_mode<synchronous>, transform_indices = @transform_3, window_bounds = array<i64: 512, 384>}, {pipeline_mode = #tpu.pipeline_mode<synchronous>, transform_indices = @transform_4, window_bounds = array<i64: 1, 384>}, {pipeline_mode = #tpu.pipeline_mode<synchronous>, transform_indices = @transform_5, window_bounds = array<i64: 1, 384>}, {transform_indices = @transform_6, window_bounds = array<i64: 1, 1>}, {transform_indices = @transform_7, window_bounds = array<i64: 8, 1>}]} {
    %c0 = arith.constant 0 : index
    %c0_0 = arith.constant 0 : index
    %0 = vector.load %arg1[%c0, %c0_0] : memref<8x20xf32, #tpu.memory_space<vmem>>, vector<8x20xf32>
    %c0_1 = arith.constant 0 : index
    %c0_2 = arith.constant 0 : index
    %1 = vector.load %arg2[%c0_1, %c0_2] : memref<20x896xf32, #tpu.memory_space<vmem>>, vector<20x896xf32>
    %cst = arith.constant dense<0.000000e+00> : vector<8x896xf32>
    %2 = tpu.matmul %0, %1, %cst {dimension_numbers = #tpu.dot_dimension_numbers<[1], [0], [0], [1], [0, 0, 1, 1], [], []>} : vector<8x20xf32>, vector<20x896xf32>, vector<8x896xf32> -> vector<8x896xf32>
    %3 = vector.extract_strided_slice %2 {offsets = [0, 0], sizes = [8, 512], strides = [1, 1]} : vector<8x896xf32> to vector<8x512xf32>
    %c0_3 = arith.constant 0 : index
    %c0_4 = arith.constant 0 : index
    %4 = vector.load %arg3[%c0_3, %c0_4] : memref<1x512xf32, #tpu.memory_space<vmem>>, vector<1x512xf32>
    %5 = vector.broadcast %4 : vector<1x512xf32> to vector<8x512xf32>
    %6 = arith.addf %3, %5 : vector<8x512xf32>
    %cst_5 = arith.constant 0.000000e+00 : f32
    %7 = vector.broadcast %cst_5 : f32 to vector<8x512xf32>
    %8 = arith.maximumf %6, %7 : vector<8x512xf32>
    %9 = vector.extract_strided_slice %2 {offsets = [0, 512], sizes = [8, 384], strides = [1, 1]} : vector<8x896xf32> to vector<8x384xf32>
    %c0_6 = arith.constant 0 : index
    %c0_7 = arith.constant 0 : index
    %10 = vector.load %arg4[%c0_6, %c0_7] : memref<512x384xf32, #tpu.memory_space<vmem>>, vector<512x384xf32>
    %cst_8 = arith.constant dense<0.000000e+00> : vector<8x384xf32>
    %11 = tpu.matmul %8, %10, %cst_8 {dimension_numbers = #tpu.dot_dimension_numbers<[1], [0], [0], [1], [0, 0, 1, 1], [], []>} : vector<8x512xf32>, vector<512x384xf32>, vector<8x384xf32> -> vector<8x384xf32>
    %12 = arith.addf %11, %9 : vector<8x384xf32>
    %c0_9 = arith.constant 0 : index
    %c0_10 = arith.constant 0 : index
    %13 = vector.load %arg5[%c0_9, %c0_10] : memref<1x384xf32, #tpu.memory_space<vmem>>, vector<1x384xf32>
    %14 = vector.broadcast %13 : vector<1x384xf32> to vector<8x384xf32>
    %15 = arith.addf %12, %14 : vector<8x384xf32>
    %cst_11 = arith.constant 0.000000e+00 : f32
    %16 = vector.broadcast %cst_11 : f32 to vector<8x384xf32>
    %17 = arith.maximumf %15, %16 : vector<8x384xf32>
    %c0_12 = arith.constant 0 : index
    %c0_13 = arith.constant 0 : index
    %18 = vector.load %arg6[%c0_12, %c0_13] : memref<1x384xf32, #tpu.memory_space<vmem>>, vector<1x384xf32>
    %19 = vector.broadcast %18 : vector<1x384xf32> to vector<8x384xf32>
    %20 = arith.mulf %17, %19 : vector<8x384xf32>
    %cst_14 = arith.constant dense<0.000000e+00> : vector<8xf32>
    %21 = vector.multi_reduction <add>, %20, %cst_14 [1] : vector<8x384xf32> to vector<8xf32>
    %22 = vector.shape_cast %21 : vector<8xf32> to vector<8x1xf32>
    %c0_15 = arith.constant 0 : index
    %c0_16 = arith.constant 0 : index
    %23 = memref.load %arg7[%c0_15, %c0_16] : memref<1x1xf32, #tpu.memory_space<smem>>
    %24 = vector.broadcast %23 : f32 to vector<8x1xf32>
    %25 = arith.addf %22, %24 : vector<8x1xf32>
    %c0_17 = arith.constant 0 : index
    %c0_18 = arith.constant 0 : index
    %26 = vector.load %arg8[%c0_17, %c0_18] : memref<8x1xf32, #tpu.memory_space<vmem>>, vector<8x1xf32>
    tpu.vector_store %arg8[%c0_17, %c0_18], %25 {strides = array<i32>} : memref<8x1xf32, #tpu.memory_space<vmem>>, vector<8x1xf32>,
    return
  }
  func.func @transform_0(%arg0: i32) -> (i32, i32) {
    %c0_i32 = arith.constant 0 : i32
    %c0_i32_0 = arith.constant 0 : i32
    return %arg0, %c0_i32 : i32, i32
  }
  func.func @transform_1(%arg0: i32) -> (i32, i32) {
    %c0_i32 = arith.constant 0 : i32
    %c0_i32_0 = arith.constant 0 : i32
    %c0_i32_1 = arith.constant 0 : i32
    return %c0_i32, %c0_i32_0 : i32, i32
  }
  func.func @transform_2(%arg0: i32) -> (i32, i32) {
    %c0_i32 = arith.constant 0 : i32
    %c0_i32_0 = arith.constant 0 : i32
    %c0_i32_1 = arith.constant 0 : i32
    return %c0_i32, %c0_i32_0 : i32, i32
  }
  func.func @transform_3(%arg0: i32) -> (i32, i32) {
    %c0_i32 = arith.constant 0 : i32
    %c0_i32_0 = arith.constant 0 : i32
    %c0_i32_1 = arith.constant 0 : i32
    return %c0_i32, %c0_i32_0 : i32, i32
  }
  func.func @transform_4(%arg0: i32) -> (i32, i32) {
    %c0_i32 = arith.constant 0 : i32
    %c0_i32_0 = arith.constant 0 : i32
    %c0_i32_1 = arith.constant 0 : i32
    return %c0_i32, %c0_i32_0 : i32, i32
  }
  func.func @transform_5(%arg0: i32) -> (i32, i32) {
    %c0_i32 = arith.constant 0 : i32
    %c0_i32_0 = arith.constant 0 : i32
    %c0_i32_1 = arith.constant 0 : i32
    return %c0_i32, %c0_i32_0 : i32, i32
  }
  func.func @transform_6(%arg0: i32) -> (i32, i32) {
    %c0_i32 = arith.constant 0 : i32
    %c0_i32_0 = arith.constant 0 : i32
    %c0_i32_1 = arith.constant 0 : i32
    return %c0_i32, %c0_i32_0 : i32, i32
  }
  func.func @transform_7(%arg0: i32) -> (i32, i32) {
    %c0_i32 = arith.constant 0 : i32
    %c0_i32_0 = arith.constant 0 : i32
    return %arg0, %c0_i32 : i32, i32
  }
}

</mosaic_0001>

<llo_original>
// kernel: tpu_custom_call.1
$region0: #{tpu_custom_call.1}
  #allocation0 [shape = 'u32[]', space=smem, size = 0x4, offset = 0x4, fixed_abs, tag = 'smem constant byte address 0x4 - core index']
  #allocation1 [shape = 'u32[72,128]{1,0:T(1,128)}', space=vmem, size = 0x9000, scoped, tag = 'internal scratch']
  #allocation2 [shape = 'f32[1,1]{1,0:T(1,128)S(6)}', space=smem, size = 0x200, scoped, tag = 'scoped memory for tpu_custom_call.1']
  %s0 = inlined_call_operand.hbm [shape: f32[8,20], index: 0, kind: input, shape index: {}]
  %s1 = inlined_call_operand.hbm [shape: f32[20,896], index: 1, kind: input, shape index: {}]
  %s2 = inlined_call_operand.hbm [shape: f32[1,512], index: 2, kind: input, shape index: {}]
  %s3 = inlined_call_operand.hbm [shape: f32[512,384], index: 3, kind: input, shape index: {}]
  %s4 = inlined_call_operand.vmem [shape: f32[1,384], index: 4, kind: input, shape index: {}]
  %s5 = inlined_call_operand.vmem [shape: f32[1,384], index: 5, kind: input, shape index: {}]
  %s6 = inlined_call_operand.<no memory space> [shape: f32[1,1], index: 6, kind: input, shape index: {}]
  %s7 = inlined_call_operand.vmem [shape: f32[8,1], index: 7, kind: output, shape index: {}]
  %s8 = sld [smem:[#allocation0]]
  $region54: #{tpu_custom_call.1} parent=0
    _
  %s10 = ssub.s32 1, %s8
  %s11 = scalar_select 0, %s10, %s8
  %12 = sst [smem:[#allocation2]] %s6
  $region1: #{tpu_custom_call.1} parent=0
    #allocation3 [shape = 'u8[4096]{0}', space=vmem, size = 0x1000, scoped, tag = 'input window, operand 0, single buffered']
    #allocation4 [shape = 's32[1]{0}', space=sflag, size = 0x4, scoped, tag = 'scoped memory for tpu_custom_call.1']
    #allocation5 [shape = 'u8[86016]{0}', space=vmem, size = 0x15000, scoped, tag = 'input window, operand 1, single buffered']
    #allocation6 [shape = 's32[1]{0}', space=sflag, size = 0x4, scoped, tag = 'scoped memory for tpu_custom_call.1']
    #allocation7 [shape = 'u8[2048]{0}', space=vmem, size = 0x800, scoped, tag = 'input window, operand 2, single buffered']
    #allocation8 [shape = 'u8[786432]{0}', space=vmem, size = 0xc0000, scoped, tag = 'input window, operand 3, single buffered']
    #allocation9 [shape = 's32[1]{0}', space=sflag, size = 0x4, scoped, tag = 'scoped memory for tpu_custom_call.1']
    %13 = vsyncpa [#allocation4], 0
    %14 = vsyncpa [#allocation6], 0
    %15 = vsyncpa [#allocation9], 0
    // Predicated region
    $region2: #{tpu_custom_call.1} parent=1 // pred_check
      _
    $region3: #{tpu_custom_call.1} parent=1 // pred_check_branch
      %17 = sbr.rel (0) target = $region5
    $region4: #{tpu_custom_call.1} parent=1 // pred_region
      %19 = vsyncadd [#allocation4], 0
      %s21 = sshll.u32 %s0, 4
      %s22 = int_to_ptr.hbm [resolvable:$true] %s21
      %s23 = sshll.u32 [#allocation3], 4
      %s24 = int_to_ptr.vmem [resolvable:$true] %s23
      %26 = dma.hbm_to_vmem [thread:$0]  %s22, 128, %s24, [#allocation4]
    $region5: #{tpu_custom_call.1} parent=1 // pred_fallthru
      _
    // Predicated region
    $region6: #{tpu_custom_call.1} parent=1 // pred_check
      _
    $region7: #{tpu_custom_call.1} parent=1 // pred_check_branch
      %28 = sbr.rel (0) target = $region9
    $region8: #{tpu_custom_call.1} parent=1 // pred_region
      %30 = vsyncadd [#allocation6], 0
      %s31 = sshll.u32 %s1, 4
      %s32 = int_to_ptr.hbm [resolvable:$true] %s31
      %s33 = sshll.u32 [#allocation5], 4
      %s34 = int_to_ptr.vmem [resolvable:$true] %s33
      %39 = dma.hbm_to_vmem [thread:$0]  %s32, 2688, %s34, [#allocation6], 896, 896, 56
    $region9: #{tpu_custom_call.1} parent=1 // pred_fallthru
      _
    // Predicated region
    $region10: #{tpu_custom_call.1} parent=1 // pred_check
      _
    $region11: #{tpu_custom_call.1} parent=1 // pred_check_branch
      %41 = sbr.rel (0) target = $region13
    $region12: #{tpu_custom_call.1} parent=1 // pred_region
      %43 = vsyncadd [#allocation6], 0
      %s45 = sshll.u32 %s2, 4
      %s46 = int_to_ptr.hbm [resolvable:$true] %s45
      %s47 = sshll.u32 [#allocation7], 4
      %s48 = int_to_ptr.vmem [resolvable:$true] %s47
      %50 = dma.hbm_to_vmem [thread:$0]  %s46, 64, %s48, [#allocation6]
    $region13: #{tpu_custom_call.1} parent=1 // pred_fallthru
      _
    // Predicated region
    $region14: #{tpu_custom_call.1} parent=1 // pred_check
      _
    $region15: #{tpu_custom_call.1} parent=1 // pred_check_branch
      %52 = sbr.rel (0) target = $region17
    $region16: #{tpu_custom_call.1} parent=1 // pred_region
      %54 = vsyncadd [#allocation9], 0
      %s55 = sshll.u32 %s3, 4
      %s56 = int_to_ptr.hbm [resolvable:$true] %s55
      %s57 = sshll.u32 [#allocation8], 4
      %s58 = int_to_ptr.vmem [resolvable:$true] %s57
      %63 = dma.hbm_to_vmem [thread:$0]  %s56, 24576, %s58, [#allocation9], 384, 384, 24
    $region17: #{tpu_custom_call.1} parent=1 // pred_fallthru
      _
    // Predicated region
    $region18: #{tpu_custom_call.1} parent=1 // pred_check
      _
    $region19: #{tpu_custom_call.1} parent=1 // pred_check_branch
      %65 = sbr.rel (0) target = $region21
    $region20: #{tpu_custom_call.1} parent=1 // pred_region
      _
    $region21: #{tpu_custom_call.1} parent=1 // pred_fallthru
      _
    // Predicated region
    $region22: #{tpu_custom_call.1} parent=1 // pred_check
      _
    $region23: #{tpu_custom_call.1} parent=1 // pred_check_branch
      %67 = sbr.rel (0) target = $region25
    $region24: #{tpu_custom_call.1} parent=1 // pred_region
      _
    $region25: #{tpu_custom_call.1} parent=1 // pred_fallthru
      _
    // Predicated region
    $region26: #{tpu_custom_call.1} parent=1 // pred_check
      _
    $region27: #{tpu_custom_call.1} parent=1 // pred_check_branch
      %69 = sbr.rel (0) target = $region29
    $region28: #{tpu_custom_call.1} parent=1 // pred_region
      _
    $region29: #{tpu_custom_call.1} parent=1 // pred_fallthru
      _
    // Predicated region
    $region30: #{tpu_custom_call.1} parent=1 // pred_check
      _
    $region31: #{tpu_custom_call.1} parent=1 // pred_check_branch
      %71 = sbr.rel (0) target = $region33
    $region32: #{tpu_custom_call.1} parent=1 // pred_region
      %73 = dma.done [#allocation4], 128
    $region33: #{tpu_custom_call.1} parent=1 // pred_fallthru
      _
    // Predicated region
    $region34: #{tpu_custom_call.1} parent=1 // pred_check
      _
    $region35: #{tpu_custom_call.1} parent=1 // pred_check_branch
      %75 = sbr.rel (0) target = $region37
    $region36: #{tpu_custom_call.1} parent=1 // pred_region
      %77 = dma.done [#allocation6], 2688
    $region37: #{tpu_custom_call.1} parent=1 // pred_fallthru
      _
    // Predicated region
    $region38: #{tpu_custom_call.1} parent=1 // pred_check
      _
    $region39: #{tpu_custom_call.1} parent=1 // pred_check_branch
      %79 = sbr.rel (0) target = $region41
    $region40: #{tpu_custom_call.1} parent=1 // pred_region
      %81 = dma.done [#allocation6], 64
    $region41: #{tpu_custom_call.1} parent=1 // pred_fallthru
      _
    // Predicated region
    $region42: #{tpu_custom_call.1} parent=1 // pred_check
      _
    $region43: #{tpu_custom_call.1} parent=1 // pred_check_branch
      %83 = sbr.rel (0) target = $region45
    $region44: #{tpu_custom_call.1} parent=1 // pred_region
      %85 = dma.done [#allocation9], 24576
    $region45: #{tpu_custom_call.1} parent=1 // pred_fallthru
      _
    %v86 = vld [vmem:[#allocation3] sm:$0xff]
    %v87 = vld [vmem:[#allocation5] sm:$0xff]
    %v88 = vld [vmem:[#allocation5 + $0x8] sm:$0xff]
    %v89 = vld [vmem:[#allocation5 + $0x10] sm:$0xff]
    %v90 = vld [vmem:[#allocation5 + $0x18] sm:$0xff]
    %v91 = vld [vmem:[#allocation5 + $0x20] sm:$0xff]
    %v92 = vld [vmem:[#allocation5 + $0x28] sm:$0xff]
    %v93 = vld [vmem:[#allocation5 + $0x30] sm:$0xff]
    %v94 = vld [vmem:[#allocation5 + $0x38] sm:$0xff]
    %v95 = vld [vmem:[#allocation5 + $0x40] sm:$0xff]
    %v96 = vld [vmem:[#allocation5 + $0x48] sm:$0xff]
    %v97 = vld [vmem:[#allocation5 + $0x50] sm:$0xff]
    %v98 = vld [vmem:[#allocation5 + $0x58] sm:$0xff]
    %v99 = vld [vmem:[#allocation5 + $0x60] sm:$0xff]
    %v100 = vld [vmem:[#allocation5 + $0x68] sm:$0xff]
    %v101 = vld [vmem:[#allocation5 + $0x70] sm:$0xf]
    %v102 = vld [vmem:[#allocation5 + $0x78] sm:$0xf]
    %v103 = vld [vmem:[#allocation5 + $0x80] sm:$0xf]
    %v104 = vld [vmem:[#allocation5 + $0x88] sm:$0xf]
    %v105 = vld [vmem:[#allocation5 + $0x90] sm:$0xf]
    %v106 = vld [vmem:[#allocation5 + $0x98] sm:$0xf]
    %v107 = vld [vmem:[#allocation5 + $0xa0] sm:$0xf]
    %vm108 = vcmask 162816
    %v110 = vsel %vm108, %v86, 0
    %vm112 = vcmask 1043456
    %v114 = vsel %vm112, %v101, 0
    %v117 = vsel %vm112, %v102, 0
    %v120 = vsel %vm112, %v103, 0
    %v123 = vsel %vm112, %v104, 0
    %v126 = vsel %vm112, %v105, 0
    %v129 = vsel %vm112, %v106, 0
    %v132 = vsel %vm112, %v107, 0
    %134 = vmatpush.msra.mxu0 0.0
    %135 = vmatpush.msra.mxu0 0.0
    %136 = vmatpush.msra.mxu0 0.0
    %137 = vmatpush.msra.mxu0 0.0
    %138 = vmatpush.msra.mxu0 0.0
    %139 = vmatpush.msra.mxu0 0.0
    %140 = vmatpush.msra.mxu0 0.0
    %141 = vmatpush.msra.mxu0 0.0
    %142 = vmatpush.msra.mxu0 0.0
    %143 = vmatpush.msra.mxu0 0.0
    %144 = vmatpush.msra.mxu0 0.0
    %145 = vmatpush.msra.mxu0 0.0
    %146 = vmatpush.msra.mxu0 0.0
    %147 = vmatpush.msra.mxu0 %v114
    %148 = vmatpush.msra.mxu0 %v94
    %149 = vmatpush.msra.mxu0 %v87
    %150 = vmatmul.f32.gmra.mxu0 %v110
    %v151 = vpop.f32.mrf.mxu0
    %v152 = vadd.f32 0.0, %v151
    %153 = vdwg.mxu0
    %154 = vmatpush.msra.mxu0 0.0
    %155 = vmatpush.msra.mxu0 0.0
    %156 = vmatpush.msra.mxu0 0.0
    %157 = vmatpush.msra.mxu0 0.0
    %158 = vmatpush.msra.mxu0 0.0
    %159 = vmatpush.msra.mxu0 0.0
    %160 = vmatpush.msra.mxu0 0.0
    %161 = vmatpush.msra.mxu0 0.0
    %162 = vmatpush.msra.mxu0 0.0
    %163 = vmatpush.msra.mxu0 0.0
    %164 = vmatpush.msra.mxu0 0.0
    %165 = vmatpush.msra.mxu0 0.0
    %166 = vmatpush.msra.mxu0 0.0
    %167 = vmatpush.msra.mxu0 %v117
    %168 = vmatpush.msra.mxu0 %v95
    %169 = vmatpush.msra.mxu0 %v88
    %170 = vmatmul.f32.gmra.mxu0 %v110
    %v171 = vpop.f32.mrf.mxu0
    %v172 = vadd.f32 0.0, %v171
    %173 = vdwg.mxu0
    %174 = vmatpush.msra.mxu0 0.0
    %175 = vmatpush.msra.mxu0 0.0
    %176 = vmatpush.msra.mxu0 0.0
    %177 = vmatpush.msra.mxu0 0.0
    %178 = vmatpush.msra.mxu0 0.0
    %179 = vmatpush.msra.mxu0 0.0
    %180 = vmatpush.msra.mxu0 0.0
    %181 = vmatpush.msra.mxu0 0.0
    %182 = vmatpush.msra.mxu0 0.0
    %183 = vmatpush.msra.mxu0 0.0
    %184 = vmatpush.msra.mxu0 0.0
    %185 = vmatpush.msra.mxu0 0.0
    %186 = vmatpush.msra.mxu0 0.0
    %187 = vmatpush.msra.mxu0 %v120
    %188 = vmatpush.msra.mxu0 %v96
    %189 = vmatpush.msra.mxu0 %v89
    %190 = vmatmul.f32.gmra.mxu0 %v110
    %v191 = vpop.f32.mrf.mxu0
    %v192 = vadd.f32 0.0, %v191
    %193 = vdwg.mxu0
    %194 = vmatpush.msra.mxu0 0.0
    %195 = vmatpush.msra.mxu0 0.0
    %196 = vmatpush.msra.mxu0 0.0
    %197 = vmatpush.msra.mxu0 0.0
    %198 = vmatpush.msra.mxu0 0.0
    %199 = vmatpush.msra.mxu0 0.0
    %200 = vmatpush.msra.mxu0 0.0
    %201 = vmatpush.msra.mxu0 0.0
    %202 = vmatpush.msra.mxu0 0.0
    %203 = vmatpush.msra.mxu0 0.0
    %204 = vmatpush.msra.mxu0 0.0
    %205 = vmatpush.msra.mxu0 0.0
    %206 = vmatpush.msra.mxu0 0.0
    %207 = vmatpush.msra.mxu0 %v123
    %208 = vmatpush.msra.mxu0 %v97
    %209 = vmatpush.msra.mxu0 %v90
    %210 = vmatmul.f32.gmra.mxu0 %v110
    %v211 = vpop.f32.mrf.mxu0
    %v212 = vadd.f32 0.0, %v211
    %213 = vdwg.mxu0
    %214 = vmatpush.msra.mxu0 0.0
    %215 = vmatpush.msra.mxu0 0.0
    %216 = vmatpush.msra.mxu0 0.0
    %217 = vmatpush.msra.mxu0 0.0
    %218 = vmatpush.msra.mxu0 0.0
    %219 = vmatpush.msra.mxu0 0.0
    %220 = vmatpush.msra.mxu0 0.0
    %221 = vmatpush.msra.mxu0 0.0
    %222 = vmatpush.msra.mxu0 0.0
    %223 = vmatpush.msra.mxu0 0.0
    %224 = vmatpush.msra.mxu0 0.0
    %225 = vmatpush.msra.mxu0 0.0
    %226 = vmatpush.msra.mxu0 0.0
    %227 = vmatpush.msra.mxu0 %v126
    %228 = vmatpush.msra.mxu0 %v98
    %229 = vmatpush.msra.mxu0 %v91
    %230 = vmatmul.f32.gmra.mxu0 %v110
    %v231 = vpop.f32.mrf.mxu0
    %v232 = vadd.f32 0.0, %v231
    %233 = vdwg.mxu0
    %234 = vmatpush.msra.mxu0 0.0
    %235 = vmatpush.msra.mxu0 0.0
    %236 = vmatpush.msra.mxu0 0.0
    %237 = vmatpush.msra.mxu0 0.0
    %238 = vmatpush.msra.mxu0 0.0
    %239 = vmatpush.msra.mxu0 0.0
    %240 = vmatpush.msra.mxu0 0.0
    %241 = vmatpush.msra.mxu0 0.0
    %242 = vmatpush.msra.mxu0 0.0
    %243 = vmatpush.msra.mxu0 0.0
    %244 = vmatpush.msra.mxu0 0.0
    %245 = vmatpush.msra.mxu0 0.0
    %246 = vmatpush.msra.mxu0 0.0
    %247 = vmatpush.msra.mxu0 %v129
    %248 = vmatpush.msra.mxu0 %v99
    %249 = vmatpush.msra.mxu0 %v92
    %250 = vmatmul.f32.gmra.mxu0 %v110
    %v251 = vpop.f32.mrf.mxu0
    %v252 = vadd.f32 0.0, %v251
    %253 = vdwg.mxu0
    %254 = vmatpush.msra.mxu0 0.0
    %255 = vmatpush.msra.mxu0 0.0
    %256 = vmatpush.msra.mxu0 0.0
    %257 = vmatpush.msra.mxu0 0.0
    %258 = vmatpush.msra.mxu0 0.0
    %259 = vmatpush.msra.mxu0 0.0
    %260 = vmatpush.msra.mxu0 0.0
    %261 = vmatpush.msra.mxu0 0.0
    %262 = vmatpush.msra.mxu0 0.0
    %263 = vmatpush.msra.mxu0 0.0
    %264 = vmatpush.msra.mxu0 0.0
    %265 = vmatpush.msra.mxu0 0.0
    %266 = vmatpush.msra.mxu0 0.0
    %267 = vmatpush.msra.mxu0 %v132
    %268 = vmatpush.msra.mxu0 %v100
    %269 = vmatpush.msra.mxu0 %v93
    %270 = vmatmul.f32.gmra.mxu0 %v110
    %v271 = vpop.f32.mrf.mxu0
    %v272 = vadd.f32 0.0, %v271
    %273 = vdwg.mxu0
    %v274 = vld [vmem:[#allocation7] sm:$0xf]
    %v276 = vperm.slane %v274, 0
    %v277 = vperm.slane %v274, 1
    %v278 = vperm.slane %v274, 2
    %v279 = vperm.slane %v274, 3
    %v284 = vadd.f32 %v152, %v276
    %v285 = vadd.f32 %v172, %v277
    %v286 = vadd.f32 %v192, %v278
    %v287 = vadd.f32 %v212, %v279
    %v288 = vmax.f32 %v284, 0.0
    %v289 = vmax.f32 %v285, 0.0
    %v290 = vmax.f32 %v286, 0.0
    %v291 = vmax.f32 %v287, 0.0
    %v292 = vld [vmem:[#allocation8] sm:$0xff]
    %v293 = vld [vmem:[#allocation8 + $0x8] sm:$0xff]
    %v294 = vld [vmem:[#allocation8 + $0x10] sm:$0xff]
    %v295 = vld [vmem:[#allocation8 + $0x18] sm:$0xff]
    %v296 = vld [vmem:[#allocation8 + $0x20] sm:$0xff]
    %v297 = vld [vmem:[#allocation8 + $0x28] sm:$0xff]
    %v298 = vld [vmem:[#allocation8 + $0x30] sm:$0xff]
    %v299 = vld [vmem:[#allocation8 + $0x38] sm:$0xff]
    %v300 = vld [vmem:[#allocation8 + $0x40] sm:$0xff]
    %v301 = vld [vmem:[#allocation8 + $0x48] sm:$0xff]
    %v302 = vld [vmem:[#allocation8 + $0x50] sm:$0xff]
    %v303 = vld [vmem:[#allocation8 + $0x58] sm:$0xff]
    %v304 = vld [vmem:[#allocation8 + $0x60] sm:$0xff]
    %v305 = vld [vmem:[#allocation8 + $0x68] sm:$0xff]
    %v306 = vld [vmem:[#allocation8 + $0x70] sm:$0xff]
    %v307 = vld [vmem:[#allocation8 + $0x78] sm:$0xff]
    %v308 = vld [vmem:[#allocation8 + $0x80] sm:$0xff]
    %v309 = vld [vmem:[#allocation8 + $0x88] sm:$0xff]
    %v310 = vld [vmem:[#allocation8 + $0x90] sm:$0xff]
    %v311 = vld [vmem:[#allocation8 + $0x98] sm:$0xff]
    %v312 = vld [vmem:[#allocation8 + $0xa0] sm:$0xff]
    %v313 = vld [vmem:[#allocation8 + $0xa8] sm:$0xff]
    %v314 = vld [vmem:[#allocation8 + $0xb0] sm:$0xff]
    %v315 = vld [vmem:[#allocation8 + $0xb8] sm:$0xff]
    %v316 = vld [vmem:[#allocation8 + $0xc0] sm:$0xff]
    %v317 = vld [vmem:[#allocation8 + $0xc8] sm:$0xff]
    %v318 = vld [vmem:[#allocation8 + $0xd0] sm:$0xff]
    %v319 = vld [vmem:[#allocation8 + $0xd8] sm:$0xff]
    %v320 = vld [vmem:[#allocation8 + $0xe0] sm:$0xff]
    %v321 = vld [vmem:[#allocation8 + $0xe8] sm:$0xff]
    %v322 = vld [vmem:[#allocation8 + $0xf0] sm:$0xff]
    %v323 = vld [vmem:[#allocation8 + $0xf8] sm:$0xff]
    %v324 = vld [vmem:[#allocation8 + $0x100] sm:$0xff]
    %v325 = vld [vmem:[#allocation8 + $0x108] sm:$0xff]
    %v326 = vld [vmem:[#allocation8 + $0x110] sm:$0xff]
    %v327 = vld [vmem:[#allocation8 + $0x118] sm:$0xff]
    %v328 = vld [vmem:[#allocation8 + $0x120] sm:$0xff]
    %v329 = vld [vmem:[#allocation8 + $0x128] sm:$0xff]
    %v330 = vld [vmem:[#allocation8 + $0x130] sm:$0xff]
    %v331 = vld [vmem:[#allocation8 + $0x138] sm:$0xff]
    %v332 = vld [vmem:[#allocation8 + $0x140] sm:$0xff]
    %v333 = vld [vmem:[#allocation8 + $0x148] sm:$0xff]
    %v334 = vld [vmem:[#allocation8 + $0x150] sm:$0xff]
    %v335 = vld [vmem:[#allocation8 + $0x158] sm:$0xff]
    %v336 = vld [vmem:[#allocation8 + $0x160] sm:$0xff]
    %v337 = vld [vmem:[#allocation8 + $0x168] sm:$0xff]
    %v338 = vld [vmem:[#allocation8 + $0x170] sm:$0xff]
    %v339 = vld [vmem:[#allocation8 + $0x178] sm:$0xff]
    %v340 = vld [vmem:[#allocation8 + $0x180] sm:$0xff]
    %v341 = vld [vmem:[#allocation8 + $0x188] sm:$0xff]
    %v342 = vld [vmem:[#allocation8 + $0x190] sm:$0xff]
    %v343 = vld [vmem:[#allocation8 + $0x198] sm:$0xff]
    %v344 = vld [vmem:[#allocation8 + $0x1a0] sm:$0xff]
    %v345 = vld [vmem:[#allocation8 + $0x1a8] sm:$0xff]
    %v346 = vld [vmem:[#allocation8 + $0x1b0] sm:$0xff]
    %v347 = vld [vmem:[#allocation8 + $0x1b8] sm:$0xff]
    %v348 = vld [vmem:[#allocation8 + $0x1c0] sm:$0xff]
    %v349 = vld [vmem:[#allocation8 + $0x1c8] sm:$0xff]
    %v350 = vld [vmem:[#allocation8 + $0x1d0] sm:$0xff]
    %v351 = vld [vmem:[#allocation8 + $0x1d8] sm:$0xff]
    %v352 = vld [vmem:[#allocation8 + $0x1e0] sm:$0xff]
    %v353 = vld [vmem:[#allocation8 + $0x1e8] sm:$0xff]
    %v354 = vld [vmem:[#allocation8 + $0x1f0] sm:$0xff]
    %v355 = vld [vmem:[#allocation8 + $0x1f8] sm:$0xff]
    %v356 = vld [vmem:[#allocation8 + $0x200] sm:$0xff]
    %v357 = vld [vmem:[#allocation8 + $0x208] sm:$0xff]
    %v358 = vld [vmem:[#allocation8 + $0x210] sm:$0xff]
    %v359 = vld [vmem:[#allocation8 + $0x218] sm:$0xff]
    %v360 = vld [vmem:[#allocation8 + $0x220] sm:$0xff]
    %v361 = vld [vmem:[#allocation8 + $0x228] sm:$0xff]
    %v362 = vld [vmem:[#allocation8 + $0x230] sm:$0xff]
    %v363 = vld [vmem:[#allocation8 + $0x238] sm:$0xff]
    %v364 = vld [vmem:[#allocation8 + $0x240] sm:$0xff]
    %v365 = vld [vmem:[#allocation8 + $0x248] sm:$0xff]
    %v366 = vld [vmem:[#allocation8 + $0x250] sm:$0xff]
    %v367 = vld [vmem:[#allocation8 + $0x258] sm:$0xff]
    %v368 = vld [vmem:[#allocation8 + $0x260] sm:$0xff]
    %v369 = vld [vmem:[#allocation8 + $0x268] sm:$0xff]
    %v370 = vld [vmem:[#allocation8 + $0x270] sm:$0xff]
    %v371 = vld [vmem:[#allocation8 + $0x278] sm:$0xff]
    %v372 = vld [vmem:[#allocation8 + $0x280] sm:$0xff]
    %v373 = vld [vmem:[#allocation8 + $0x288] sm:$0xff]
    %v374 = vld [vmem:[#allocation8 + $0x290] sm:$0xff]
    %v375 = vld [vmem:[#allocation8 + $0x298] sm:$0xff]
    %v376 = vld [vmem:[#allocation8 + $0x2a0] sm:$0xff]
    %v377 = vld [vmem:[#allocation8 + $0x2a8] sm:$0xff]
    %v378 = vld [vmem:[#allocation8 + $0x2b0] sm:$0xff]
    %v379 = vld [vmem:[#allocation8 + $0x2b8] sm:$0xff]
    %v380 = vld [vmem:[#allocation8 + $0x2c0] sm:$0xff]
    %v381 = vld [vmem:[#allocation8 + $0x2c8] sm:$0xff]
    %v382 = vld [vmem:[#allocation8 + $0x2d0] sm:$0xff]
    %v383 = vld [vmem:[#allocation8 + $0x2d8] sm:$0xff]
    %v384 = vld [vmem:[#allocation8 + $0x2e0] sm:$0xff]
    %v385 = vld [vmem:[#allocation8 + $0x2e8] sm:$0xff]
    %v386 = vld [vmem:[#allocation8 + $0x2f0] sm:$0xff]
    %v387 = vld [vmem:[#allocation8 + $0x2f8] sm:$0xff]
    %v388 = vld [vmem:[#allocation8 + $0x300] sm:$0xff]
    %v389 = vld [vmem:[#allocation8 + $0x308] sm:$0xff]
    %v390 = vld [vmem:[#allocation8 + $0x310] sm:$0xff]
    %v391 = vld [vmem:[#allocation8 + $0x318] sm:$0xff]
    %v392 = vld [vmem:[#allocation8 + $0x320] sm:$0xff]
    %v393 = vld [vmem:[#allocation8 + $0x328] sm:$0xff]
    %v394 = vld [vmem:[#allocation8 + $0x330] sm:$0xff]
    %v395 = vld [vmem:[#allocation8 + $0x338] sm:$0xff]
    %v396 = vld [vmem:[#allocation8 + $0x340] sm:$0xff]
    %v397 = vld [vmem:[#allocation8 + $0x348] sm:$0xff]
    %v398 = vld [vmem:[#allocation8 + $0x350] sm:$0xff]
    %v399 = vld [vmem:[#allocation8 + $0x358] sm:$0xff]
    %v400 = vld [vmem:[#allocation8 + $0x360] sm:$0xff]
    %v401 = vld [vmem:[#allocation8 + $0x368] sm:$0xff]
    %v402 = vld [vmem:[#allocation8 + $0x370] sm:$0xff]
    %v403 = vld [vmem:[#allocation8 + $0x378] sm:$0xff]
    %v404 = vld [vmem:[#allocation8 + $0x380] sm:$0xff]
    %v405 = vld [vmem:[#allocation8 + $0x388] sm:$0xff]
    %v406 = vld [vmem:[#allocation8 + $0x390] sm:$0xff]
    %v407 = vld [vmem:[#allocation8 + $0x398] sm:$0xff]
    %v408 = vld [vmem:[#allocation8 + $0x3a0] sm:$0xff]
    %v409 = vld [vmem:[#allocation8 + $0x3a8] sm:$0xff]
    %v410 = vld [vmem:[#allocation8 + $0x3b0] sm:$0xff]
    %v411 = vld [vmem:[#allocation8 + $0x3b8] sm:$0xff]
    %v412 = vld [vmem:[#allocation8 + $0x3c0] sm:$0xff]
    %v413 = vld [vmem:[#allocation8 + $0x3c8] sm:$0xff]
    %v414 = vld [vmem:[#allocation8 + $0x3d0] sm:$0xff]
    %v415 = vld [vmem:[#allocation8 + $0x3d8] sm:$0xff]
    %v416 = vld [vmem:[#allocation8 + $0x3e0] sm:$0xff]
    %v417 = vld [vmem:[#allocation8 + $0x3e8] sm:$0xff]
    %v418 = vld [vmem:[#allocation8 + $0x3f0] sm:$0xff]
    %v419 = vld [vmem:[#allocation8 + $0x3f8] sm:$0xff]
    %v420 = vld [vmem:[#allocation8 + $0x400] sm:$0xff]
    %v421 = vld [vmem:[#allocation8 + $0x408] sm:$0xff]
    %v422 = vld [vmem:[#allocation8 + $0x410] sm:$0xff]
    %v423 = vld [vmem:[#allocation8 + $0x418] sm:$0xff]
    %v424 = vld [vmem:[#allocation8 + $0x420] sm:$0xff]
    %v425 = vld [vmem:[#allocation8 + $0x428] sm:$0xff]
    %v426 = vld [vmem:[#allocation8 + $0x430] sm:$0xff]
    %v427 = vld [vmem:[#allocation8 + $0x438] sm:$0xff]
    %v428 = vld [vmem:[#allocation8 + $0x440] sm:$0xff]
    %v429 = vld [vmem:[#allocation8 + $0x448] sm:$0xff]
    %v430 = vld [vmem:[#allocation8 + $0x450] sm:$0xff]
    %v431 = vld [vmem:[#allocation8 + $0x458] sm:$0xff]
    %v432 = vld [vmem:[#allocation8 + $0x460] sm:$0xff]
    %v433 = vld [vmem:[#allocation8 + $0x468] sm:$0xff]
    %v434 = vld [vmem:[#allocation8 + $0x470] sm:$0xff]
    %v435 = vld [vmem:[#allocation8 + $0x478] sm:$0xff]
    %v436 = vld [vmem:[#allocation8 + $0x480] sm:$0xff]
    %v437 = vld [vmem:[#allocation8 + $0x488] sm:$0xff]
    %v438 = vld [vmem:[#allocation8 + $0x490] sm:$0xff]
    %v439 = vld [vmem:[#allocation8 + $0x498] sm:$0xff]
    %v440 = vld [vmem:[#allocation8 + $0x4a0] sm:$0xff]
    %v441 = vld [vmem:[#allocation8 + $0x4a8] sm:$0xff]
    %v442 = vld [vmem:[#allocation8 + $0x4b0] sm:$0xff]
    %v443 = vld [vmem:[#allocation8 + $0x4b8] sm:$0xff]
    %v444 = vld [vmem:[#allocation8 + $0x4c0] sm:$0xff]
    %v445 = vld [vmem:[#allocation8 + $0x4c8] sm:$0xff]
    %v446 = vld [vmem:[#allocation8 + $0x4d0] sm:$0xff]
    %v447 = vld [vmem:[#allocation8 + $0x4d8] sm:$0xff]
    %v448 = vld [vmem:[#allocation8 + $0x4e0] sm:$0xff]
    %v449 = vld [vmem:[#allocation8 + $0x4e8] sm:$0xff]
    %v450 = vld [vmem:[#allocation8 + $0x4f0] sm:$0xff]
    %v451 = vld [vmem:[#allocation8 + $0x4f8] sm:$0xff]
    %v452 = vld [vmem:[#allocation8 + $0x500] sm:$0xff]
    %v453 = vld [vmem:[#allocation8 + $0x508] sm:$0xff]
    %v454 = vld [vmem:[#allocation8 + $0x510] sm:$0xff]
    %v455 = vld [vmem:[#allocation8 + $0x518] sm:$0xff]
    %v456 = vld [vmem:[#allocation8 + $0x520] sm:$0xff]
    %v457 = vld [vmem:[#allocation8 + $0x528] sm:$0xff]
    %v458 = vld [vmem:[#allocation8 + $0x530] sm:$0xff]
    %v459 = vld [vmem:[#allocation8 + $0x538] sm:$0xff]
    %v460 = vld [vmem:[#allocation8 + $0x540] sm:$0xff]
    %v461 = vld [vmem:[#allocation8 + $0x548] sm:$0xff]
    %v462 = vld [vmem:[#allocation8 + $0x550] sm:$0xff]
    %v463 = vld [vmem:[#allocation8 + $0x558] sm:$0xff]
    %v464 = vld [vmem:[#allocation8 + $0x560] sm:$0xff]
    %v465 = vld [vmem:[#allocation8 + $0x568] sm:$0xff]
    %v466 = vld [vmem:[#allocation8 + $0x570] sm:$0xff]
    %v467 = vld [vmem:[#allocation8 + $0x578] sm:$0xff]
    %v468 = vld [vmem:[#allocation8 + $0x580] sm:$0xff]
    %v469 = vld [vmem:[#allocation8 + $0x588] sm:$0xff]
    %v470 = vld [vmem:[#allocation8 + $0x590] sm:$0xff]
    %v471 = vld [vmem:[#allocation8 + $0x598] sm:$0xff]
    %v472 = vld [vmem:[#allocation8 + $0x5a0] sm:$0xff]
    %v473 = vld [vmem:[#allocation8 + $0x5a8] sm:$0xff]
    %v474 = vld [vmem:[#allocation8 + $0x5b0] sm:$0xff]
    %v475 = vld [vmem:[#allocation8 + $0x5b8] sm:$0xff]
    %v476 = vld [vmem:[#allocation8 + $0x5c0] sm:$0xff]
    %v477 = vld [vmem:[#allocation8 + $0x5c8] sm:$0xff]
    %v478 = vld [vmem:[#allocation8 + $0x5d0] sm:$0xff]
    %v479 = vld [vmem:[#allocation8 + $0x5d8] sm:$0xff]
    %v480 = vld [vmem:[#allocation8 + $0x5e0] sm:$0xff]
    %v481 = vld [vmem:[#allocation8 + $0x5e8] sm:$0xff]
    %v482 = vld [vmem:[#allocation8 + $0x5f0] sm:$0xff]
    %v483 = vld [vmem:[#allocation8 + $0x5f8] sm:$0xff]
    %484 = vmatpush.msra.mxu0 %v337
    %485 = vmatpush.msra.mxu0 %v334
    %486 = vmatpush.msra.mxu0 %v331
    %487 = vmatpush.msra.mxu0 %v328
    %488 = vmatpush.msra.mxu0 %v325
    %489 = vmatpush.msra.mxu0 %v322
    %490 = vmatpush.msra.mxu0 %v319
    %491 = vmatpush.msra.mxu0 %v316
    %492 = vmatpush.msra.mxu0 %v313
    %493 = vmatpush.msra.mxu0 %v310
    %494 = vmatpush.msra.mxu0 %v307
    %495 = vmatpush.msra.mxu0 %v304
    %496 = vmatpush.msra.mxu0 %v301
    %497 = vmatpush.msra.mxu0 %v298
    %498 = vmatpush.msra.mxu0 %v295
    %499 = vmatpush.msra.mxu0 %v292
    %500 = vmatmul.f32.gmra.mxu0 %v288
    %v501 = vpop.f32.mrf.mxu0
    %v502 = vadd.f32 %v232, %v501
    %503 = vdwg.mxu0
    %504 = vmatpush.msra.mxu0 %v385
    %505 = vmatpush.msra.mxu0 %v382
    %506 = vmatpush.msra.mxu0 %v379
    %507 = vmatpush.msra.mxu0 %v376
    %508 = vmatpush.msra.mxu0 %v373
    %509 = vmatpush.msra.mxu0 %v370
    %510 = vmatpush.msra.mxu0 %v367
    %511 = vmatpush.msra.mxu0 %v364
    %512 = vmatpush.msra.mxu0 %v361
    %513 = vmatpush.msra.mxu0 %v358
    %514 = vmatpush.msra.mxu0 %v355
    %515 = vmatpush.msra.mxu0 %v352
    %516 = vmatpush.msra.mxu0 %v349
    %517 = vmatpush.msra.mxu0 %v346
    %518 = vmatpush.msra.mxu0 %v343
    %519 = vmatpush.msra.mxu0 %v340
    %520 = vmatmul.f32.gmra.mxu0 %v289
    %v521 = vpop.f32.mrf.mxu0
    %v522 = vadd.f32 %v502, %v521
    %523 = vdwg.mxu0
    %524 = vmatpush.msra.mxu0 %v433
    %525 = vmatpush.msra.mxu0 %v430
    %526 = vmatpush.msra.mxu0 %v427
    %527 = vmatpush.msra.mxu0 %v424
    %528 = vmatpush.msra.mxu0 %v421
    %529 = vmatpush.msra.mxu0 %v418
    %530 = vmatpush.msra.mxu0 %v415
    %531 = vmatpush.msra.mxu0 %v412
    %532 = vmatpush.msra.mxu0 %v409
    %533 = vmatpush.msra.mxu0 %v406
    %534 = vmatpush.msra.mxu0 %v403
    %535 = vmatpush.msra.mxu0 %v400
    %536 = vmatpush.msra.mxu0 %v397
    %537 = vmatpush.msra.mxu0 %v394
    %538 = vmatpush.msra.mxu0 %v391
    %539 = vmatpush.msra.mxu0 %v388
    %540 = vmatmul.f32.gmra.mxu0 %v290
    %v541 = vpop.f32.mrf.mxu0
    %v542 = vadd.f32 %v522, %v541
    %543 = vdwg.mxu0
    %544 = vmatpush.msra.mxu0 %v481
    %545 = vmatpush.msra.mxu0 %v478
    %546 = vmatpush.msra.mxu0 %v475
    %547 = vmatpush.msra.mxu0 %v472
    %548 = vmatpush.msra.mxu0 %v469
    %549 = vmatpush.msra.mxu0 %v466
    %550 = vmatpush.msra.mxu0 %v463
    %551 = vmatpush.msra.mxu0 %v460
    %552 = vmatpush.msra.mxu0 %v457
    %553 = vmatpush.msra.mxu0 %v454
    %554 = vmatpush.msra.mxu0 %v451
    %555 = vmatpush.msra.mxu0 %v448
    %556 = vmatpush.msra.mxu0 %v445
    %557 = vmatpush.msra.mxu0 %v442
    %558 = vmatpush.msra.mxu0 %v439
    %559 = vmatpush.msra.mxu0 %v436
    %560 = vmatmul.f32.gmra.mxu0 %v291
    %v561 = vpop.f32.mrf.mxu0
    %v562 = vadd.f32 %v542, %v561
    %563 = vdwg.mxu0
    %564 = vmatpush.msra.mxu0 %v338
    %565 = vmatpush.msra.mxu0 %v335
    %566 = vmatpush.msra.mxu0 %v332
    %567 = vmatpush.msra.mxu0 %v329
    %568 = vmatpush.msra.mxu0 %v326
    %569 = vmatpush.msra.mxu0 %v323
    %570 = vmatpush.msra.mxu0 %v320
    %571 = vmatpush.msra.mxu0 %v317
    %572 = vmatpush.msra.mxu0 %v314
    %573 = vmatpush.msra.mxu0 %v311
    %574 = vmatpush.msra.mxu0 %v308
    %575 = vmatpush.msra.mxu0 %v305
    %576 = vmatpush.msra.mxu0 %v302
    %577 = vmatpush.msra.mxu0 %v299
    %578 = vmatpush.msra.mxu0 %v296
    %579 = vmatpush.msra.mxu0 %v293
    %580 = vmatmul.f32.gmra.mxu0 %v288
    %v581 = vpop.f32.mrf.mxu0
    %v582 = vadd.f32 %v252, %v581
    %583 = vdwg.mxu0
    %584 = vmatpush.msra.mxu0 %v386
    %585 = vmatpush.msra.mxu0 %v383
    %586 = vmatpush.msra.mxu0 %v380
    %587 = vmatpush.msra.mxu0 %v377
    %588 = vmatpush.msra.mxu0 %v374
    %589 = vmatpush.msra.mxu0 %v371
    %590 = vmatpush.msra.mxu0 %v368
    %591 = vmatpush.msra.mxu0 %v365
    %592 = vmatpush.msra.mxu0 %v362
    %593 = vmatpush.msra.mxu0 %v359
    %594 = vmatpush.msra.mxu0 %v356
    %595 = vmatpush.msra.mxu0 %v353
    %596 = vmatpush.msra.mxu0 %v350
    %597 = vmatpush.msra.mxu0 %v347
    %598 = vmatpush.msra.mxu0 %v344
    %599 = vmatpush.msra.mxu0 %v341
    %600 = vmatmul.f32.gmra.mxu0 %v289
    %v601 = vpop.f32.mrf.mxu0
    %v602 = vadd.f32 %v582, %v601
    %603 = vdwg.mxu0
    %604 = vmatpush.msra.mxu0 %v434
    %605 = vmatpush.msra.mxu0 %v431
    %606 = vmatpush.msra.mxu0 %v428
    %607 = vmatpush.msra.mxu0 %v425
    %608 = vmatpush.msra.mxu0 %v422
    %609 = vmatpush.msra.mxu0 %v419
    %610 = vmatpush.msra.mxu0 %v416
    %611 = vmatpush.msra.mxu0 %v413
    %612 = vmatpush.msra.mxu0 %v410
    %613 = vmatpush.msra.mxu0 %v407
    %614 = vmatpush.msra.mxu0 %v404
    %615 = vmatpush.msra.mxu0 %v401
    %616 = vmatpush.msra.mxu0 %v398
    %617 = vmatpush.msra.mxu0 %v395
    %618 = vmatpush.msra.mxu0 %v392
    %619 = vmatpush.msra.mxu0 %v389
    %620 = vmatmul.f32.gmra.mxu0 %v290
    %v621 = vpop.f32.mrf.mxu0
    %v622 = vadd.f32 %v602, %v621
    %623 = vdwg.mxu0
    %624 = vmatpush.msra.mxu0 %v482
    %625 = vmatpush.msra.mxu0 %v479
    %626 = vmatpush.msra.mxu0 %v476
    %627 = vmatpush.msra.mxu0 %v473
    %628 = vmatpush.msra.mxu0 %v470
    %629 = vmatpush.msra.mxu0 %v467
    %630 = vmatpush.msra.mxu0 %v464
    %631 = vmatpush.msra.mxu0 %v461
    %632 = vmatpush.msra.mxu0 %v458
    %633 = vmatpush.msra.mxu0 %v455
    %634 = vmatpush.msra.mxu0 %v452
    %635 = vmatpush.msra.mxu0 %v449
    %636 = vmatpush.msra.mxu0 %v446
    %637 = vmatpush.msra.mxu0 %v443
    %638 = vmatpush.msra.mxu0 %v440
    %639 = vmatpush.msra.mxu0 %v437
    %640 = vmatmul.f32.gmra.mxu0 %v291
    %v641 = vpop.f32.mrf.mxu0
    %v642 = vadd.f32 %v622, %v641
    %643 = vdwg.mxu0
    %644 = vmatpush.msra.mxu0 %v339
    %645 = vmatpush.msra.mxu0 %v336
    %646 = vmatpush.msra.mxu0 %v333
    %647 = vmatpush.msra.mxu0 %v330
    %648 = vmatpush.msra.mxu0 %v327
    %649 = vmatpush.msra.mxu0 %v324
    %650 = vmatpush.msra.mxu0 %v321
    %651 = vmatpush.msra.mxu0 %v318
    %652 = vmatpush.msra.mxu0 %v315
    %653 = vmatpush.msra.mxu0 %v312
    %654 = vmatpush.msra.mxu0 %v309
    %655 = vmatpush.msra.mxu0 %v306
    %656 = vmatpush.msra.mxu0 %v303
    %657 = vmatpush.msra.mxu0 %v300
    %658 = vmatpush.msra.mxu0 %v297
    %659 = vmatpush.msra.mxu0 %v294
    %660 = vmatmul.f32.gmra.mxu0 %v288
    %v661 = vpop.f32.mrf.mxu0
    %v662 = vadd.f32 %v272, %v661
    %663 = vdwg.mxu0
    %664 = vmatpush.msra.mxu0 %v387
    %665 = vmatpush.msra.mxu0 %v384
    %666 = vmatpush.msra.mxu0 %v381
    %667 = vmatpush.msra.mxu0 %v378
    %668 = vmatpush.msra.mxu0 %v375
    %669 = vmatpush.msra.mxu0 %v372
    %670 = vmatpush.msra.mxu0 %v369
    %671 = vmatpush.msra.mxu0 %v366
    %672 = vmatpush.msra.mxu0 %v363
    %673 = vmatpush.msra.mxu0 %v360
    %674 = vmatpush.msra.mxu0 %v357
    %675 = vmatpush.msra.mxu0 %v354
    %676 = vmatpush.msra.mxu0 %v351
    %677 = vmatpush.msra.mxu0 %v348
    %678 = vmatpush.msra.mxu0 %v345
    %679 = vmatpush.msra.mxu0 %v342
    %680 = vmatmul.f32.gmra.mxu0 %v289
    %v681 = vpop.f32.mrf.mxu0
    %v682 = vadd.f32 %v662, %v681
    %683 = vdwg.mxu0
    %684 = vmatpush.msra.mxu0 %v435
    %685 = vmatpush.msra.mxu0 %v432
    %686 = vmatpush.msra.mxu0 %v429
    %687 = vmatpush.msra.mxu0 %v426
    %688 = vmatpush.msra.mxu0 %v423
    %689 = vmatpush.msra.mxu0 %v420
    %690 = vmatpush.msra.mxu0 %v417
    %691 = vmatpush.msra.mxu0 %v414
    %692 = vmatpush.msra.mxu0 %v411
    %693 = vmatpush.msra.mxu0 %v408
    %694 = vmatpush.msra.mxu0 %v405
    %695 = vmatpush.msra.mxu0 %v402
    %696 = vmatpush.msra.mxu0 %v399
    %697 = vmatpush.msra.mxu0 %v396
    %698 = vmatpush.msra.mxu0 %v393
    %699 = vmatpush.msra.mxu0 %v390
    %700 = vmatmul.f32.gmra.mxu0 %v290
    %v701 = vpop.f32.mrf.mxu0
    %v702 = vadd.f32 %v682, %v701
    %703 = vdwg.mxu0
    %704 = vmatpush.msra.mxu0 %v483
    %705 = vmatpush.msra.mxu0 %v480
    %706 = vmatpush.msra.mxu0 %v477
    %707 = vmatpush.msra.mxu0 %v474
    %708 = vmatpush.msra.mxu0 %v471
    %709 = vmatpush.msra.mxu0 %v468
    %710 = vmatpush.msra.mxu0 %v465
    %711 = vmatpush.msra.mxu0 %v462
    %712 = vmatpush.msra.mxu0 %v459
    %713 = vmatpush.msra.mxu0 %v456
    %714 = vmatpush.msra.mxu0 %v453
    %715 = vmatpush.msra.mxu0 %v450
    %716 = vmatpush.msra.mxu0 %v447
    %717 = vmatpush.msra.mxu0 %v444
    %718 = vmatpush.msra.mxu0 %v441
    %719 = vmatpush.msra.mxu0 %v438
    %720 = vmatmul.f32.gmra.mxu0 %v291
    %v721 = vpop.f32.mrf.mxu0
    %v722 = vadd.f32 %v702, %v721
    %723 = vdwg.mxu0
    %v724 = vld [vmem:[%s4] sm:$0x7]
    %v726 = vperm.slane %v724, 0
    %v727 = vperm.slane %v724, 1
    %v728 = vperm.slane %v724, 2
    %v732 = vadd.f32 %v562, %v726
    %v733 = vadd.f32 %v642, %v727
    %v734 = vadd.f32 %v722, %v728
    %v735 = vmax.f32 %v732, 0.0
    %v736 = vmax.f32 %v733, 0.0
    %v737 = vmax.f32 %v734, 0.0
    %v738 = vld [vmem:[%s5] sm:$0x7]
    %v740 = vperm.slane %v738, 0
    %v741 = vperm.slane %v738, 1
    %v742 = vperm.slane %v738, 2
    %v746 = vmul.f32 %v735, %v740
    %v747 = vmul.f32 %v736, %v741
    %v748 = vmul.f32 %v737, %v742
    %v749 = vadd.f32 %v746, %v747
    %v750 = vadd.f32 %v749, %v748
    %751 = vadd.xlane.f32.xlu0 %v750
    %v752 = vpop.xlane.xlu0 %751
    %s753 = sld [smem:[#allocation2]]
    %v754 = vstv %s753
    %v755 = vadd.f32 %v752, %v754
    %vm756 = vcmask 7168
    %757 = vst.msk [vmem:[%s7] sm:$0xff] %vm756, %v755
    // Predicated region
    $region46: #{tpu_custom_call.1} parent=1 // pred_check
      _
    $region47: #{tpu_custom_call.1} parent=1 // pred_check_branch
      %759 = sbr.rel (0) target = $region49
    $region48: #{tpu_custom_call.1} parent=1 // pred_region
      _
    $region49: #{tpu_custom_call.1} parent=1 // pred_fallthru
      _
    // Predicated region
    $region50: #{tpu_custom_call.1} parent=1 // pred_check
      _
    $region51: #{tpu_custom_call.1} parent=1 // pred_check_branch
      %761 = sbr.rel (0) target = $region53
    $region52: #{tpu_custom_call.1} parent=1 // pred_region
      _
    $region53: #{tpu_custom_call.1} parent=1 // pred_fallthru
      _
    %762 = vsyncpa [#allocation4], 1
    %763 = vsyncpa [#allocation6], 1
    %764 = vsyncpa [#allocation9], 1

</llo_original>
